<compile_context>
chip_gen: v6e
topology: v6e:2x2x1
jax: 0.10.0
libtpu: 0.0.40
codegen_flags: <defaults>
</compile_context>

<pallas_src>
import jax
import jax.numpy as jnp
from jax import lax
from jax.experimental import pallas as pl
from jax.experimental.pallas import tpu as pltpu

# ---- model config (stand-in for cfg.model_temp) -----------------------------
# Final length after the stack must be 1 (Flatten + Linear(in_features=outch)).
#   L=64 -> conv(ks=5, stride=2) -> 30 -> AvgPool(3) -> 10 -> conv(ks=10) -> 1
MODEL_TEMP = {
    "blk1": dict(inch=1, outch=8,  ks=5,  stride=2, pool=True,  dropout=True),
    "blk2": dict(inch=8, outch=16, ks=10, stride=1, pool=False, dropout=False),
}
SEQ_LEN = 64
BATCH = 8          # multiple of 8 -> branch row-slices are sublane-aligned
DP = 0.1           # dropout prob (identity at inference)


# ---- the single fused forward kernel -----------------------------------------
def _fused_forward_kernel(x_ref, t1_ref, w2p_ref, consts_ref, noise_ref, out_ref):
    # x_ref:      (3B, Lin)          rows = [x1; x2; x3]
    # t1_ref:     (Lin, C1*Lc1)      Toeplitz conv1 weights, BN1 scale folded
    # w2p_ref:    (C1*Lc1, C2)       pool-matrix @ flattened conv2 weights, BN2 scale folded
    # consts_ref: (24, 256)          packed small constants:
    #                                  row 0  cols 0:C1*Lc1 = shift1 (conv1 bias + BN1 shift)
    #                                  row 1  cols 0:C2     = shift2 (conv2 bias + BN2 shift)
    #                                  row 2  col 0 = b_reg, col 1 = b_diff
    #                                  rows 8:8+C2 cols 0:3 = [w_reg | w_diff_a | w_diff_b]
    # noise_ref:  (B, C2)            noise (shared across the 3 branches)
    # out_ref:    (4B, C2)           rows 0:3B = noisy features [z1; z2; z3]
    #                                rows 3B:4B cols 0:5 = [y1, y3, y12, y23, y31]
    B, C = noise_ref.shape
    n1 = t1_ref.shape[1]

    shift1 = consts_ref[0:1, 0:n1]          # (1, C1*Lc1)
    shift2 = consts_ref[1:2, 0:C]           # (1, C2)
    breg = consts_ref[2:3, 0:1]             # (1, 1)
    bd = consts_ref[2:3, 1:2]               # (1, 1)
    whead = consts_ref[8:8 + C, 0:3]        # (C2, 3)  [w_reg | w_diff_a | w_diff_b]

    # ---- block 1: Conv1d (Toeplitz matmul) + BN(eval) shift + LeakyReLU(0.2)
    h = jnp.dot(x_ref[...], t1_ref[...], preferred_element_type=jnp.float32)
    h = h + shift1
    h = jnp.where(h >= 0.0, h, 0.2 * h)                                   # (3B, C1*Lc1)

    # ---- AvgPool1d(3) + block 2 Conv1d fused into ONE matmul, + BN + LeakyReLU
    f = jnp.dot(h, w2p_ref[...], preferred_element_type=jnp.float32) + shift2
    f = jnp.where(f >= 0.0, f, 0.2 * f)                                   # (3B, C2)

    # ---- noisy features (same noise tensor for all three branches)
    noise = noise_ref[...]
    z = f + jnp.concatenate([noise, noise, noise], axis=0)                # (3B, C2)

    # ---- heads: one matmul of stacked [f; z] against packed [w_reg | w_da | w_db]
    fz = jnp.concatenate([f, z], axis=0)                                  # (6B, C2)
    hd = jnp.dot(fz, whead, preferred_element_type=jnp.float32)           # (6B, 3)

    y1 = hd[0 * B:1 * B, 0:1] + breg                                      # f1 @ w_reg
    y3 = hd[2 * B:3 * B, 0:1] + breg                                      # f3 @ w_reg
    y12 = hd[3 * B:4 * B, 1:2] + hd[4 * B:5 * B, 2:3] + bd                # z1@wa + z2@wb
    y23 = hd[4 * B:5 * B, 1:2] + hd[5 * B:6 * B, 2:3] + bd                # z2@wa + z3@wb
    y31 = hd[5 * B:6 * B, 1:2] + hd[3 * B:4 * B, 2:3] + bd                # z3@wa + z1@wb

    # pack the 5 per-sample scalars into B extra rows (cols 0..4) without
    # masked sub-stores: pure VPU selects, then ONE full-tile store.
    col = lax.broadcasted_iota(jnp.int32, (B, C), 1)
    yrows = (jnp.where(col == 0, y1, 0.0)
             + jnp.where(col == 1, y3, 0.0)
             + jnp.where(col == 2, y12, 0.0)
             + jnp.where(col == 3, y23, 0.0)
             + jnp.where(col == 4, y31, 0.0))                             # (B, C2)

    out_ref[...] = jnp.concatenate([z, yrows], axis=0)                    # (4B, C2)


# ---- parameters (deterministic synthetic init, raw PyTorch-style layout) ------
def init_params(key):
    params = {"blocks": []}
    names = list(MODEL_TEMP.keys())
    for name in names:
        blk = MODEL_TEMP[name]
        key, kw, kb, kg, kbe, km, kv = jax.random.split(key, 7)
        Cout, Cin, K = blk["outch"], blk["inch"], blk["ks"]
        params["blocks"].append(dict(
            w=0.1 * jax.random.normal(kw, (Cout, Cin, K), jnp.float32),
            bias=0.1 * jax.random.normal(kb, (Cout,), jnp.float32),
            gamma=1.0 + 0.1 * jax.random.normal(kg, (Cout,), jnp.float32),
            beta=0.1 * jax.random.normal(kbe, (Cout,), jnp.float32),
            mean=0.05 * jax.random.normal(km, (Cout,), jnp.float32),
            var=1.0 + 0.2 * jax.random.uniform(kv, (Cout,), jnp.float32),
            stride=blk["stride"], pool=blk["pool"]))
    C = MODEL_TEMP[names[-1]]["outch"]
    key, k1, k2, k3, k4 = jax.random.split(key, 5)
    params["w_reg"] = 0.1 * jax.random.normal(k1, (1, C), jnp.float32)
    params["b_reg"] = 0.1 * jax.random.normal(k2, (1,), jnp.float32)
    params["w_diff"] = 0.1 * jax.random.normal(k3, (1, 2 * C), jnp.float32)
    params["b_diff"] = 0.1 * jax.random.normal(k4, (1,), jnp.float32)
    return params


# ---- one-time weight layout prep (Toeplitz / pool-folded conv2 / packed consts)
def build_fused(params, seq_len):
    blk1, blk2 = params["blocks"]
    Cout1, Cin1, K1 = blk1["w"].shape
    assert Cin1 == 1, "fused path assumes Cin=1 for the first block"
    s1 = blk1["stride"]
    Lconv1 = (seq_len - K1) // s1 + 1

    scale1 = blk1["gamma"] / jnp.sqrt(blk1["var"] + 1e-5)
    shift1 = (blk1["bias"] - blk1["mean"]) * scale1 + blk1["beta"]

    # Toeplitz conv matrix with BN scale folded: T1[l, c*Lconv1 + j] = w1[c,0,l-j*s1]
    w1s = blk1["w"][:, 0, :] * scale1[:, None]                     # (Cout1, K1)
    l = jnp.arange(seq_len)[:, None]                               # (Lin, 1)
    cj = jnp.arange(Cout1 * Lconv1)[None, :]                       # (1, C1*Lconv1)
    c, j = cj // Lconv1, cj % Lconv1
    k = l - j * s1
    t1 = jnp.where((k >= 0) & (k < K1), w1s[c, jnp.clip(k, 0, K1 - 1)], 0.0)
    shift1_row = jnp.repeat(shift1, Lconv1)                        # (C1*Lconv1,)

    if blk1["pool"]:
        # AvgPool1d(3): partial final windows are dropped automatically because
        # (r % Lconv1)//3 == Lout1 never matches a column index.
        Lout1 = Lconv1 // 3
        r = jnp.arange(Cout1 * Lconv1)[:, None]
        col = jnp.arange(Cout1 * Lout1)[None, :]
        pmat = jnp.where(((r // Lconv1) == (col // Lout1))
                         & (((r % Lconv1) // 3) == (col % Lout1)),
                         1.0 / 3.0, 0.0).astype(jnp.float32)
    else:
        Lout1 = Lconv1
        pmat = jnp.eye(Cout1 * Lconv1, dtype=jnp.float32)

    Cout2, Cin2, K2 = blk2["w"].shape
    assert Cin2 == Cout1
    Lconv2 = (Lout1 - K2) // blk2["stride"] + 1
    assert Lconv2 == 1, "fused path assumes the final block reduces length to 1"
    scale2 = blk2["gamma"] / jnp.sqrt(blk2["var"] + 1e-5)
    shift2 = (blk2["bias"] - blk2["mean"]) * scale2 + blk2["beta"]
    w2t = jnp.transpose(blk2["w"], (1, 2, 0))                      # (Cin2, K2, Cout2)
    if K2 < Lout1:
        w2t = jnp.pad(w2t, ((0, 0), (0, Lout1 - K2), (0, 0)))
    w2_flat = w2t.reshape(Cin2 * Lout1, Cout2) * scale2[None, :]   # (Cin2*Lout1, Cout2)

    # perf: fold the pooling matmul into the conv2 weights (no nonlinearity between).
    w2p = pmat @ w2_flat                                           # (C1*Lconv1, Cout2)

    # pack all small per-call constants into one padded VMEM-friendly array.
    C = Cout2
    n1 = Cout1 * Lconv1
    assert C >= 5
    ncols = ((max(n1, C, 3) + 127) // 128) * 128
    nrows = ((8 + C + 7) // 8) * 8
    consts = jnp.zeros((nrows, ncols), jnp.float32)
    consts = consts.at[0, :n1].set(shift1_row)
    consts = consts.at[1, :C].set(shift2)
    consts = consts.at[2, 0].set(params["b_reg"][0])
    consts = consts.at[2, 1].set(params["b_diff"][0])
    consts = consts.at[8:8 + C, 0].set(params["w_reg"][0])         # w_reg
    consts = consts.at[8:8 + C, 1].set(params["w_diff"][0, :C])    # w_diff_a
    consts = consts.at[8:8 + C, 2].set(params["w_diff"][0, C:])    # w_diff_b

    return dict(t1=t1, w2p=w2p, consts=consts)


# ---- forward -----------------------------------------------------------------
def forward(fused, x1, x2, x3, noise_key):
    B = x1.shape[0]
    C = fused["w2p"].shape[1]
    # Stack batch + the 3 siamese branches into a single (3B, Lin) operand.
    xall = jnp.concatenate(
        [x1.reshape(B, -1), x2.reshape(B, -1), x3.reshape(B, -1)], axis=0)
    # Same key/shape as the reference so noise bits match bit-for-bit.
    noise = 0.0003 * jax.random.normal(noise_key, (B, C, 1), jnp.float32)
    noise = noise.reshape(B, C)

    vmem = pl.BlockSpec(memory_space=pltpu.MemorySpace.VMEM)
    # Whole problem fits one VMEM-resident invocation: no grid / full-array blocks.
    out = pl.pallas_call(
        _fused_forward_kernel,
        out_shape=jax.ShapeDtypeStruct((4 * B, C), jnp.float32),
        in_specs=[vmem, vmem, vmem, vmem, vmem],
        out_specs=vmem,
    )(xall, fused["t1"], fused["w2p"], fused["consts"], noise)

    z = out[0:3 * B]
    y = out[3 * B:4 * B]
    return dict(
        y12=y[:, 2:3], y23=y[:, 3:4], y31=y[:, 4:5],
        y1=y[:, 0:1], y3=y[:, 1:2],
        z1=z[0:B].reshape(B, C, 1),
        z2=z[B:2 * B].reshape(B, C, 1),
        z3=z[2 * B:3 * B].reshape(B, C, 1))


# ---- pure-JAX reference for correctness check ----------------------------------
def ref_forward(params, x1, x2, x3, noise_key):
    def ref_block(x, bp):
        w = bp["w"]
        scale = bp["gamma"] / jnp.sqrt(bp["var"] + 1e-5)
        shift = (bp["bias"] - bp["mean"]) * scale + bp["beta"]
        stride, pool = bp["stride"], bp["pool"]
        B, Cin, Lin = x.shape
        Cout, _, K = w.shape
        Lconv = (Lin - K) // stride + 1
        cols = jnp.stack(
            [x[:, :, k:k + stride * (Lconv - 1) + 1:stride] for k in range(K)],
            axis=-1)                                            # (B,Cin,Lconv,K)
        y = jnp.einsum('bclk,ock->bol', cols, w)
        y = y * scale.reshape(1, Cout, 1) + shift.reshape(1, Cout, 1)
        y = jnp.where(y >= 0, y, 0.2 * y)
        if pool:
            Lout = Lconv // 3
            y = y[:, :, :3 * Lout].reshape(B, Cout, Lout, 3).mean(-1)
        return y

    def feat(x):
        h = x
        for bp in params["blocks"]:
            h = ref_block(h, bp)
        return h

    fx1, fx2, fx3 = feat(x1), feat(x2), feat(x3)
    B, C, _ = fx1.shape
    noise = 0.0003 * jax.random.normal(noise_key, fx1.shape, jnp.float32)
    f1, f2, f3 = fx1.reshape(B, C), fx2.reshape(B, C), fx3.reshape(B, C)
    nf = noise.reshape(B, C)
    z1, z2, z3 = f1 + nf, f2 + nf, f3 + nf
    wreg, breg = params["w_reg"], params["b_reg"]
    wdiff, bd = params["w_diff"], params["b_diff"]
    wda, wdb = wdiff[:, :C].T, wdiff[:, C:].T
    return dict(
        y12=z1 @ wda + z2 @ wdb + bd,
        y23=z2 @ wda + z3 @ wdb + bd,
        y31=z3 @ wda + z1 @ wdb + bd,
        y1=f1 @ wreg.T + breg, y3=f3 @ wreg.T + breg,
        z1=z1.reshape(B, C, 1), z2=z2.reshape(B, C, 1), z3=z3.reshape(B, C, 1))


if __name__ == "__main__":
    key = jax.random.PRNGKey(0)
    pkey, k1, k2, k3, nkey = jax.random.split(key, 5)
    params = init_params(pkey)
    fused = build_fused(params, SEQ_LEN)

    x1 = jax.random.normal(k1, (BATCH, 1, SEQ_LEN), jnp.float32)
    x2 = jax.random.normal(k2, (BATCH, 1, SEQ_LEN), jnp.float32)
    x3 = jax.random.normal(k3, (BATCH, 1, SEQ_LEN), jnp.float32)

    fwd = jax.jit(forward)
    out = jax.block_until_ready(fwd(fused, x1, x2, x3, nkey))
    ref = jax.block_until_ready(ref_forward(params, x1, x2, x3, nkey))
    for name in ("y12", "y23", "y31", "y1", "y3", "z1", "z2", "z3"):
        assert out[name].shape == ref[name].shape, (name, out[name].shape)
        assert jnp.allclose(out[name], ref[name], rtol=2e-3, atol=2e-3), name

    print("KERNEL_OK")
</pallas_src>

<mosaic_0001>
module attributes {stable_mosaic.version = 11 : i64} {
  func.func @_fused_forward_kernel(%arg0: memref<24x64xf32, #tpu.memory_space<vmem>>, %arg1: memref<64x240xf32, #tpu.memory_space<vmem>>, %arg2: memref<240x16xf32, #tpu.memory_space<vmem>>, %arg3: memref<24x256xf32, #tpu.memory_space<vmem>>, %arg4: memref<8x16xf32, #tpu.memory_space<vmem>>, %arg5: memref<32x16xf32, #tpu.memory_space<vmem>>) attributes {dimension_semantics = [], scalar_prefetch = 0 : i64, scratch_operands = 0 : i64, tpu.core_type = #tpu.core_type<tc>} {
    %c0 = arith.constant 0 : index
    %c0_0 = arith.constant 0 : index
    %0 = vector.load %arg3[%c0, %c0_0] : memref<24x256xf32, #tpu.memory_space<vmem>>, vector<1x240xf32>
    %c1 = arith.constant 1 : index
    %c0_1 = arith.constant 0 : index
    %1 = vector.load %arg3[%c1, %c0_1] : memref<24x256xf32, #tpu.memory_space<vmem>>, vector<1x16xf32>
    %c2 = arith.constant 2 : index
    %c0_2 = arith.constant 0 : index
    %2 = vector.load %arg3[%c2, %c0_2] : memref<24x256xf32, #tpu.memory_space<vmem>>, vector<1x1xf32>
    %c2_3 = arith.constant 2 : index
    %c1_4 = arith.constant 1 : index
    %3 = vector.load %arg3[%c2_3, %c1_4] : memref<24x256xf32, #tpu.memory_space<vmem>>, vector<1x1xf32>
    %c8 = arith.constant 8 : index
    %c0_5 = arith.constant 0 : index
    %4 = vector.load %arg3[%c8, %c0_5] : memref<24x256xf32, #tpu.memory_space<vmem>>, vector<16x3xf32>
    %c0_6 = arith.constant 0 : index
    %c0_7 = arith.constant 0 : index
    %5 = vector.load %arg0[%c0_6, %c0_7] : memref<24x64xf32, #tpu.memory_space<vmem>>, vector<24x64xf32>
    %c0_8 = arith.constant 0 : index
    %c0_9 = arith.constant 0 : index
    %6 = vector.load %arg1[%c0_8, %c0_9] : memref<64x240xf32, #tpu.memory_space<vmem>>, vector<64x240xf32>
    %cst = arith.constant dense<0.000000e+00> : vector<24x240xf32>
    %7 = tpu.matmul %5, %6, %cst {dimension_numbers = #tpu.dot_dimension_numbers<[1], [0], [0], [1], [0, 0, 1, 1], [], []>} : vector<24x64xf32>, vector<64x240xf32>, vector<24x240xf32> -> vector<24x240xf32>
    %8 = vector.broadcast %0 : vector<1x240xf32> to vector<24x240xf32>
    %9 = arith.addf %7, %8 : vector<24x240xf32>
    %cst_10 = arith.constant 0.000000e+00 : f32
    %10 = vector.broadcast %cst_10 : f32 to vector<24x240xf32>
    %11 = arith.cmpf oge, %9, %10 : vector<24x240xf32>
    %cst_11 = arith.constant 2.000000e-01 : f32
    %12 = vector.broadcast %cst_11 : f32 to vector<24x240xf32>
    %13 = arith.mulf %12, %9 : vector<24x240xf32>
    %14 = arith.select %11, %9, %13 : vector<24x240xi1>, vector<24x240xf32>
    %c0_12 = arith.constant 0 : index
    %c0_13 = arith.constant 0 : index
    %15 = vector.load %arg2[%c0_12, %c0_13] : memref<240x16xf32, #tpu.memory_space<vmem>>, vector<240x16xf32>
    %cst_14 = arith.constant dense<0.000000e+00> : vector<24x16xf32>
    %16 = tpu.matmul %14, %15, %cst_14 {dimension_numbers = #tpu.dot_dimension_numbers<[1], [0], [0], [1], [0, 0, 1, 1], [], []>} : vector<24x240xf32>, vector<240x16xf32>, vector<24x16xf32> -> vector<24x16xf32>
    %17 = vector.broadcast %1 : vector<1x16xf32> to vector<24x16xf32>
    %18 = arith.addf %16, %17 : vector<24x16xf32>
    %cst_15 = arith.constant 0.000000e+00 : f32
    %19 = vector.broadcast %cst_15 : f32 to vector<24x16xf32>
    %20 = arith.cmpf oge, %18, %19 : vector<24x16xf32>
    %cst_16 = arith.constant 2.000000e-01 : f32
    %21 = vector.broadcast %cst_16 : f32 to vector<24x16xf32>
    %22 = arith.mulf %21, %18 : vector<24x16xf32>
    %23 = arith.select %20, %18, %22 : vector<24x16xi1>, vector<24x16xf32>
    %c0_17 = arith.constant 0 : index
    %c0_18 = arith.constant 0 : index
    %24 = vector.load %arg4[%c0_17, %c0_18] : memref<8x16xf32, #tpu.memory_space<vmem>>, vector<8x16xf32>
    %25 = tpu.concatenate %24, %24, %24 in 0 : vector<8x16xf32>, vector<8x16xf32>, vector<8x16xf32> -> vector<24x16xf32>
    %26 = arith.addf %23, %25 : vector<24x16xf32>
    %27 = tpu.concatenate %23, %26 in 0 : vector<24x16xf32>, vector<24x16xf32> -> vector<48x16xf32>
    %cst_19 = arith.constant dense<0.000000e+00> : vector<48x3xf32>
    %28 = tpu.matmul %27, %4, %cst_19 {dimension_numbers = #tpu.dot_dimension_numbers<[1], [0], [0], [1], [0, 0, 1, 1], [], []>} : vector<48x16xf32>, vector<16x3xf32>, vector<48x3xf32> -> vector<48x3xf32>
    %29 = vector.extract_strided_slice %28 {offsets = [0, 0], sizes = [8, 1], strides = [1, 1]} : vector<48x3xf32> to vector<8x1xf32>
    %30 = vector.broadcast %2 : vector<1x1xf32> to vector<8x1xf32>
    %31 = arith.addf %29, %30 : vector<8x1xf32>
    %32 = vector.extract_strided_slice %28 {offsets = [16, 0], sizes = [8, 1], strides = [1, 1]} : vector<48x3xf32> to vector<8x1xf32>
    %33 = vector.broadcast %2 : vector<1x1xf32> to vector<8x1xf32>
    %34 = arith.addf %32, %33 : vector<8x1xf32>
    %35 = vector.extract_strided_slice %28 {offsets = [24, 1], sizes = [8, 1], strides = [1, 1]} : vector<48x3xf32> to vector<8x1xf32>
    %36 = vector.extract_strided_slice %28 {offsets = [32, 2], sizes = [8, 1], strides = [1, 1]} : vector<48x3xf32> to vector<8x1xf32>
    %37 = arith.addf %35, %36 : vector<8x1xf32>
    %38 = vector.broadcast %3 : vector<1x1xf32> to vector<8x1xf32>
    %39 = arith.addf %37, %38 : vector<8x1xf32>
    %40 = vector.extract_strided_slice %28 {offsets = [32, 1], sizes = [8, 1], strides = [1, 1]} : vector<48x3xf32> to vector<8x1xf32>
    %41 = vector.extract_strided_slice %28 {offsets = [40, 2], sizes = [8, 1], strides = [1, 1]} : vector<48x3xf32> to vector<8x1xf32>
    %42 = arith.addf %40, %41 : vector<8x1xf32>
    %43 = vector.broadcast %3 : vector<1x1xf32> to vector<8x1xf32>
    %44 = arith.addf %42, %43 : vector<8x1xf32>
    %45 = vector.extract_strided_slice %28 {offsets = [40, 1], sizes = [8, 1], strides = [1, 1]} : vector<48x3xf32> to vector<8x1xf32>
    %46 = vector.extract_strided_slice %28 {offsets = [24, 2], sizes = [8, 1], strides = [1, 1]} : vector<48x3xf32> to vector<8x1xf32>
    %47 = arith.addf %45, %46 : vector<8x1xf32>
    %48 = vector.broadcast %3 : vector<1x1xf32> to vector<8x1xf32>
    %49 = arith.addf %47, %48 : vector<8x1xf32>
    %50 = tpu.iota {dimensions = array<i32: 1>} : vector<8x16xi32>
    %c0_i32 = arith.constant 0 : i32
    %51 = vector.broadcast %c0_i32 : i32 to vector<8x16xi32>
    %52 = arith.cmpi eq, %50, %51 : vector<8x16xi32>
    %cst_20 = arith.constant 0.000000e+00 : f32
    %53 = vector.shape_cast %31 : vector<8x1xf32> to vector<8x1xf32>
    %54 = vector.broadcast %53 : vector<8x1xf32> to vector<8x16xf32>
    %55 = vector.broadcast %cst_20 : f32 to vector<8x16xf32>
    %56 = arith.select %52, %54, %55 : vector<8x16xi1>, vector<8x16xf32>
    %c1_i32 = arith.constant 1 : i32
    %57 = vector.broadcast %c1_i32 : i32 to vector<8x16xi32>
    %58 = arith.cmpi eq, %50, %57 : vector<8x16xi32>
    %cst_21 = arith.constant 0.000000e+00 : f32
    %59 = vector.shape_cast %34 : vector<8x1xf32> to vector<8x1xf32>
    %60 = vector.broadcast %59 : vector<8x1xf32> to vector<8x16xf32>
    %61 = vector.broadcast %cst_21 : f32 to vector<8x16xf32>
    %62 = arith.select %58, %60, %61 : vector<8x16xi1>, vector<8x16xf32>
    %63 = arith.addf %56, %62 : vector<8x16xf32>
    %c2_i32 = arith.constant 2 : i32
    %64 = vector.broadcast %c2_i32 : i32 to vector<8x16xi32>
    %65 = arith.cmpi eq, %50, %64 : vector<8x16xi32>
    %cst_22 = arith.constant 0.000000e+00 : f32
    %66 = vector.shape_cast %39 : vector<8x1xf32> to vector<8x1xf32>
    %67 = vector.broadcast %66 : vector<8x1xf32> to vector<8x16xf32>
    %68 = vector.broadcast %cst_22 : f32 to vector<8x16xf32>
    %69 = arith.select %65, %67, %68 : vector<8x16xi1>, vector<8x16xf32>
    %70 = arith.addf %63, %69 : vector<8x16xf32>
    %c3_i32 = arith.constant 3 : i32
    %71 = vector.broadcast %c3_i32 : i32 to vector<8x16xi32>
    %72 = arith.cmpi eq, %50, %71 : vector<8x16xi32>
    %cst_23 = arith.constant 0.000000e+00 : f32
    %73 = vector.shape_cast %44 : vector<8x1xf32> to vector<8x1xf32>
    %74 = vector.broadcast %73 : vector<8x1xf32> to vector<8x16xf32>
    %75 = vector.broadcast %cst_23 : f32 to vector<8x16xf32>
    %76 = arith.select %72, %74, %75 : vector<8x16xi1>, vector<8x16xf32>
    %77 = arith.addf %70, %76 : vector<8x16xf32>
    %c4_i32 = arith.constant 4 : i32
    %78 = vector.broadcast %c4_i32 : i32 to vector<8x16xi32>
    %79 = arith.cmpi eq, %50, %78 : vector<8x16xi32>
    %cst_24 = arith.constant 0.000000e+00 : f32
    %80 = vector.shape_cast %49 : vector<8x1xf32> to vector<8x1xf32>
    %81 = vector.broadcast %80 : vector<8x1xf32> to vector<8x16xf32>
    %82 = vector.broadcast %cst_24 : f32 to vector<8x16xf32>
    %83 = arith.select %79, %81, %82 : vector<8x16xi1>, vector<8x16xf32>
    %84 = arith.addf %77, %83 : vector<8x16xf32>
    %85 = tpu.concatenate %26, %84 in 0 : vector<24x16xf32>, vector<8x16xf32> -> vector<32x16xf32>
    %c0_25 = arith.constant 0 : index
    %c0_26 = arith.constant 0 : index
    %86 = vector.load %arg5[%c0_25, %c0_26] : memref<32x16xf32, #tpu.memory_space<vmem>>, vector<32x16xf32>
    tpu.vector_store %arg5[%c0_25, %c0_26], %85 {strides = array<i32>} : memref<32x16xf32, #tpu.memory_space<vmem>>, vector<32x16xf32>,
    return
  }
}

</mosaic_0001>

<llo_original>
// kernel: forward.1
$region0: #{forward.1}
  #allocation0 [shape = 'u32[]', space=smem, size = 0x4, offset = 0x4, fixed_abs, tag = 'smem constant byte address 0x4 - core index']
  #allocation1 [shape = 'u32[144,128]{1,0:T(1,128)}', space=vmem, size = 0x12000, scoped, tag = 'internal scratch']
  %s0 = inlined_call_operand.vmem [shape: f32[24,64], index: 0, kind: input, shape index: {}]
  %s1 = inlined_call_operand.vmem [shape: f32[64,240], index: 1, kind: input, shape index: {}]
  %s2 = inlined_call_operand.vmem [shape: f32[240,16], index: 2, kind: input, shape index: {}]
  %s3 = inlined_call_operand.vmem [shape: f32[24,256], index: 3, kind: input, shape index: {}]
  %s4 = inlined_call_operand.vmem [shape: f32[8,16], index: 4, kind: input, shape index: {}]
  %s5 = inlined_call_operand.vmem [shape: f32[32,16], index: 5, kind: output, shape index: {}]
  %s6 = sld [smem:[#allocation0]]
  $region30: #{forward.1} parent=0
    _
  %s8 = ssub.s32 1, %s6
  %s9 = scalar_select 0, %s8, %s6
  // Predicated region
  $region2: #{forward.1} parent=0 // pred_check
    _
  $region3: #{forward.1} parent=0 // pred_check_branch
    %11 = sbr.rel (0) target = $region5
  $region4: #{forward.1} parent=0 // pred_region
    _
  $region5: #{forward.1} parent=0 // pred_fallthru
    _
  // Predicated region
  $region6: #{forward.1} parent=0 // pred_check
    _
  $region7: #{forward.1} parent=0 // pred_check_branch
    %13 = sbr.rel (0) target = $region9
  $region8: #{forward.1} parent=0 // pred_region
    _
  $region9: #{forward.1} parent=0 // pred_fallthru
    _
  // Predicated region
  $region10: #{forward.1} parent=0 // pred_check
    _
  $region11: #{forward.1} parent=0 // pred_check_branch
    %15 = sbr.rel (0) target = $region13
  $region12: #{forward.1} parent=0 // pred_region
    _
  $region13: #{forward.1} parent=0 // pred_fallthru
    _
  // Predicated region
  $region14: #{forward.1} parent=0 // pred_check
    _
  $region15: #{forward.1} parent=0 // pred_check_branch
    %17 = sbr.rel (0) target = $region17
  $region16: #{forward.1} parent=0 // pred_region
    _
  $region17: #{forward.1} parent=0 // pred_fallthru
    _
  // Predicated region
  $region18: #{forward.1} parent=0 // pred_check
    _
  $region19: #{forward.1} parent=0 // pred_check_branch
    %19 = sbr.rel (0) target = $region21
  $region20: #{forward.1} parent=0 // pred_region
    _
  $region21: #{forward.1} parent=0 // pred_fallthru
    _
  %v20 = vld [vmem:[%s3] ss:$8 sm:$0x3]
  %v21 = vld [vmem:[%s3 + $0x1] ss:$0 sm:$0xff]
  %v22 = vld [vmem:[%s3 + $0x2] ss:$0 sm:$0xff]
  %v23 = vld [vmem:[%s3 + $0x10] sm:$0xff]
  %v24 = vld [vmem:[%s3 + $0x20] sm:$0xff]
  %v25 = vld [vmem:[%s0] sm:$0xff]
  %v26 = vld [vmem:[%s0 + $0x8] sm:$0xff]
  %v27 = vld [vmem:[%s0 + $0x10] sm:$0xff]
  %v28 = vld [vmem:[%s1] sm:$0xff]
  %v29 = vld [vmem:[%s1 + $0x8] sm:$0xff]
  %v30 = vld [vmem:[%s1 + $0x10] sm:$0xff]
  %v31 = vld [vmem:[%s1 + $0x18] sm:$0xff]
  %v32 = vld [vmem:[%s1 + $0x20] sm:$0xff]
  %v33 = vld [vmem:[%s1 + $0x28] sm:$0xff]
  %v34 = vld [vmem:[%s1 + $0x30] sm:$0xff]
  %v35 = vld [vmem:[%s1 + $0x38] sm:$0xff]
  %v36 = vld [vmem:[%s1 + $0x40] sm:$0xff]
  %v37 = vld [vmem:[%s1 + $0x48] sm:$0xff]
  %v38 = vld [vmem:[%s1 + $0x50] sm:$0xff]
  %v39 = vld [vmem:[%s1 + $0x58] sm:$0xff]
  %v40 = vld [vmem:[%s1 + $0x60] sm:$0xff]
  %v41 = vld [vmem:[%s1 + $0x68] sm:$0xff]
  %v42 = vld [vmem:[%s1 + $0x70] sm:$0xff]
  %v43 = vld [vmem:[%s1 + $0x78] sm:$0xff]
  %v45 = vlaneseq
  %v46 = vshrl.u32 %v45, 7
  %v47 = vsub.s32 0, %v46
  %v48 = vrot.slane %v20, %v47
  %v49 = vlaneseq
  %v50 = vshrl.u32 %v49, 7
  %v51 = vsub.s32 1, %v50
  %v52 = vrot.slane %v20, %v51
  %vm55 = vcmask 523264
  %v57 = vsel %vm55, %v25, 0
  %v60 = vsel %vm55, %v26, 0
  %v63 = vsel %vm55, %v27, 0
  %65 = vmatprep.subr.mxu0 0.0
  %66 = vmatpush1.msra.mxu0 0.0
  %67 = vmatprep.subr.mxu0 0.0
  %68 = vmatpush1.msra.mxu0 0.0
  %69 = vmatprep.subr.mxu0 0.0
  %70 = vmatpush1.msra.mxu0 0.0
  %71 = vmatprep.subr.mxu0 0.0
  %72 = vmatpush1.msra.mxu0 0.0
  %73 = vmatprep.subr.mxu0 0.0
  %74 = vmatpush1.msra.mxu0 0.0
  %75 = vmatprep.subr.mxu0 0.0
  %76 = vmatpush1.msra.mxu0 0.0
  %77 = vmatprep.subr.mxu0 0.0
  %78 = vmatpush1.msra.mxu0 0.0
  %79 = vmatprep.subr.mxu0 0.0
  %80 = vmatpush1.msra.mxu0 0.0
  %81 = vmatprep.subr.mxu0 %v43
  %82 = vmatpush1.msra.mxu0 %v42
  %83 = vmatprep.subr.mxu0 %v41
  %84 = vmatpush1.msra.mxu0 %v40
  %85 = vmatprep.subr.mxu0 %v39
  %86 = vmatpush1.msra.mxu0 %v38
  %87 = vmatprep.subr.mxu0 %v37
  %88 = vmatpush1.msra.mxu0 %v36
  %89 = vmatprep.subr.mxu0 %v35
  %90 = vmatpush1.msra.mxu0 %v34
  %91 = vmatprep.subr.mxu0 %v33
  %92 = vmatpush1.msra.mxu0 %v32
  %93 = vmatprep.subr.mxu0 %v31
  %94 = vmatpush1.msra.mxu0 %v30
  %95 = vmatprep.subr.mxu0 %v29
  %96 = vmatpush1.msra.mxu0 %v28
  %97 = vmatprep.subr.mxu0 0.0
  %98 = vmatpush2.msra.mxu0 0.0
  %99 = vmatprep.subr.mxu0 0.0
  %100 = vmatpush2.msra.mxu0 0.0
  %101 = vmatprep.subr.mxu0 0.0
  %102 = vmatpush2.msra.mxu0 0.0
  %103 = vmatprep.subr.mxu0 0.0
  %104 = vmatpush2.msra.mxu0 0.0
  %105 = vmatprep.subr.mxu0 0.0
  %106 = vmatpush2.msra.mxu0 0.0
  %107 = vmatprep.subr.mxu0 0.0
  %108 = vmatpush2.msra.mxu0 0.0
  %109 = vmatprep.subr.mxu0 0.0
  %110 = vmatpush2.msra.mxu0 0.0
  %111 = vmatprep.subr.mxu0 0.0
  %112 = vmatpush2.msra.mxu0 0.0
  %113 = vmatprep.subr.mxu0 0.0
  %114 = vmatpush2.msra.mxu0 0.0
  %115 = vmatprep.subr.mxu0 0.0
  %116 = vmatpush2.msra.mxu0 0.0
  %117 = vmatprep.subr.mxu0 0.0
  %118 = vmatpush2.msra.mxu0 0.0
  %119 = vmatprep.subr.mxu0 0.0
  %120 = vmatpush2.msra.mxu0 0.0
  %121 = vmatprep.subr.mxu0 0.0
  %122 = vmatpush2.msra.mxu0 0.0
  %123 = vmatprep.subr.mxu0 0.0
  %124 = vmatpush2.msra.mxu0 0.0
  %125 = vmatprep.subr.mxu0 0.0
  %126 = vmatpush2.msra.mxu0 0.0
  %127 = vmatprep.subr.mxu0 0.0
  %128 = vmatpush2.msra.mxu0 0.0
  %129 = vmatprep.mubr.f32.mxu0 0.0
  %130 = vmatmul.mubr.f32.gmra.mxu0 %v57
  %v131 = vpop.f32.mrf.mxu0
  %v132 = vadd.f32 %v48, %v131
  %v133 = vpop.f32.mrf.mxu0
  %v134 = vadd.f32 %v52, %v133
  %135 = vmatprep.mubr.f32.mxu0 0.0
  %136 = vmatmul.mubr.f32.gmra.mxu0 %v60
  %v137 = vpop.f32.mrf.mxu0
  %v138 = vadd.f32 %v48, %v137
  %v139 = vpop.f32.mrf.mxu0
  %v140 = vadd.f32 %v52, %v139
  %141 = vmatprep.mubr.f32.mxu0 0.0
  %142 = vmatmul.mubr.f32.gmra.mxu0 %v63
  %v143 = vpop.f32.mrf.mxu0
  %v144 = vadd.f32 %v48, %v143
  %v145 = vpop.f32.mrf.mxu0
  %v146 = vadd.f32 %v52, %v145
  %147 = vdwg.mxu0
  %vm148 = vcmp.ge.f32.partialorder %v132, 0.0
  %vm149 = vcmp.ge.f32.partialorder %v134, 0.0
  %vm150 = vcmp.ge.f32.partialorder %v138, 0.0
  %vm151 = vcmp.ge.f32.partialorder %v140, 0.0
  %vm152 = vcmp.ge.f32.partialorder %v144, 0.0
  %vm153 = vcmp.ge.f32.partialorder %v146, 0.0
  %v154 = vmul.f32 %v132, 0.2
  %v155 = vmul.f32 %v134, 0.2
  %v156 = vmul.f32 %v138, 0.2
  %v157 = vmul.f32 %v140, 0.2
  %v158 = vmul.f32 %v144, 0.2
  %v159 = vmul.f32 %v146, 0.2
  %v160 = vsel %vm148, %v132, %v154
  %v161 = vsel %vm149, %v134, %v155
  %v162 = vsel %vm150, %v138, %v156
  %v163 = vsel %vm151, %v140, %v157
  %v164 = vsel %vm152, %v144, %v158
  %v165 = vsel %vm153, %v146, %v159
  %v166 = vld [vmem:[%s2] sm:$0xff]
  %v167 = vld [vmem:[%s2 + $0x8] sm:$0xff]
  %v168 = vld [vmem:[%s2 + $0x10] sm:$0xff]
  %v169 = vld [vmem:[%s2 + $0x18] sm:$0xff]
  %v170 = vld [vmem:[%s2 + $0x20] sm:$0xff]
  %v171 = vld [vmem:[%s2 + $0x28] sm:$0xff]
  %v172 = vld [vmem:[%s2 + $0x30] sm:$0xff]
  %v173 = vld [vmem:[%s2 + $0x38] sm:$0xff]
  %v174 = vld [vmem:[%s2 + $0x40] sm:$0xff]
  %v175 = vld [vmem:[%s2 + $0x48] sm:$0xff]
  %v176 = vld [vmem:[%s2 + $0x50] sm:$0xff]
  %v177 = vld [vmem:[%s2 + $0x58] sm:$0xff]
  %v178 = vld [vmem:[%s2 + $0x60] sm:$0xff]
  %v179 = vld [vmem:[%s2 + $0x68] sm:$0xff]
  %v180 = vld [vmem:[%s2 + $0x70] sm:$0xff]
  %v181 = vld [vmem:[%s2 + $0x78] sm:$0xff]
  %v182 = vld [vmem:[%s2 + $0x80] sm:$0xff]
  %v183 = vld [vmem:[%s2 + $0x88] sm:$0xff]
  %v184 = vld [vmem:[%s2 + $0x90] sm:$0xff]
  %v185 = vld [vmem:[%s2 + $0x98] sm:$0xff]
  %v186 = vld [vmem:[%s2 + $0xa0] sm:$0xff]
  %v187 = vld [vmem:[%s2 + $0xa8] sm:$0xff]
  %v188 = vld [vmem:[%s2 + $0xb0] sm:$0xff]
  %v189 = vld [vmem:[%s2 + $0xb8] sm:$0xff]
  %v190 = vld [vmem:[%s2 + $0xc0] sm:$0xff]
  %v191 = vld [vmem:[%s2 + $0xc8] sm:$0xff]
  %v192 = vld [vmem:[%s2 + $0xd0] sm:$0xff]
  %v193 = vld [vmem:[%s2 + $0xd8] sm:$0xff]
  %v194 = vld [vmem:[%s2 + $0xe0] sm:$0xff]
  %v195 = vld [vmem:[%s2 + $0xe8] sm:$0xff]
  %vm196 = vcmask 916480
  %v198 = vsel %vm196, %v161, 0
  %v201 = vsel %vm196, %v163, 0
  %v204 = vsel %vm196, %v165, 0
  %206 = vmatprep.subr.mxu0 0.0
  %207 = vmatpush1.msra.mxu0 %v181
  %208 = vmatprep.subr.mxu0 0.0
  %209 = vmatpush1.msra.mxu0 %v180
  %210 = vmatprep.subr.mxu0 0.0
  %211 = vmatpush1.msra.mxu0 %v179
  %212 = vmatprep.subr.mxu0 0.0
  %213 = vmatpush1.msra.mxu0 %v178
  %214 = vmatprep.subr.mxu0 0.0
  %215 = vmatpush1.msra.mxu0 %v177
  %216 = vmatprep.subr.mxu0 0.0
  %217 = vmatpush1.msra.mxu0 %v176
  %218 = vmatprep.subr.mxu0 0.0
  %219 = vmatpush1.msra.mxu0 %v175
  %220 = vmatprep.subr.mxu0 0.0
  %221 = vmatpush1.msra.mxu0 %v174
  %222 = vmatprep.subr.mxu0 0.0
  %223 = vmatpush1.msra.mxu0 %v173
  %224 = vmatprep.subr.mxu0 0.0
  %225 = vmatpush1.msra.mxu0 %v172
  %226 = vmatprep.subr.mxu0 0.0
  %227 = vmatpush1.msra.mxu0 %v171
  %228 = vmatprep.subr.mxu0 0.0
  %229 = vmatpush1.msra.mxu0 %v170
  %230 = vmatprep.subr.mxu0 0.0
  %231 = vmatpush1.msra.mxu0 %v169
  %232 = vmatprep.subr.mxu0 0.0
  %233 = vmatpush1.msra.mxu0 %v168
  %234 = vmatprep.subr.mxu0 0.0
  %235 = vmatpush1.msra.mxu0 %v167
  %236 = vmatprep.subr.mxu0 0.0
  %237 = vmatpush1.msra.mxu0 %v166
  %238 = vmatprep.subr.mxu0 0.0
  %239 = vmatpush2.msra.mxu0 0.0
  %240 = vmatprep.subr.mxu0 0.0
  %241 = vmatpush2.msra.mxu0 0.0
  %242 = vmatprep.subr.mxu0 0.0
  %243 = vmatpush2.msra.mxu0 %v195
  %244 = vmatprep.subr.mxu0 0.0
  %245 = vmatpush2.msra.mxu0 %v194
  %246 = vmatprep.subr.mxu0 0.0
  %247 = vmatpush2.msra.mxu0 %v193
  %248 = vmatprep.subr.mxu0 0.0
  %249 = vmatpush2.msra.mxu0 %v192
  %250 = vmatprep.subr.mxu0 0.0
  %251 = vmatpush2.msra.mxu0 %v191
  %252 = vmatprep.subr.mxu0 0.0
  %253 = vmatpush2.msra.mxu0 %v190
  %254 = vmatprep.subr.mxu0 0.0
  %255 = vmatpush2.msra.mxu0 %v189
  %256 = vmatprep.subr.mxu0 0.0
  %257 = vmatpush2.msra.mxu0 %v188
  %258 = vmatprep.subr.mxu0 0.0
  %259 = vmatpush2.msra.mxu0 %v187
  %260 = vmatprep.subr.mxu0 0.0
  %261 = vmatpush2.msra.mxu0 %v186
  %262 = vmatprep.subr.mxu0 0.0
  %263 = vmatpush2.msra.mxu0 %v185
  %264 = vmatprep.subr.mxu0 0.0
  %265 = vmatpush2.msra.mxu0 %v184
  %266 = vmatprep.subr.mxu0 0.0
  %267 = vmatpush2.msra.mxu0 %v183
  %268 = vmatprep.subr.mxu0 0.0
  %269 = vmatpush2.msra.mxu0 %v182
  %270 = vmatprep.mubr.f32.mxu0 %v198
  %271 = vmatmul.mubr.f32.gmra.mxu0 %v160
  %v272 = vpop.f32.mrf.mxu0
  %v273 = vadd.f32 %v21, %v272
  %v274 = vpop.f32.mrf.mxu0
  %275 = vmatprep.mubr.f32.mxu0 %v201
  %276 = vmatmul.mubr.f32.gmra.mxu0 %v162
  %v277 = vpop.f32.mrf.mxu0
  %v278 = vadd.f32 %v21, %v277
  %v279 = vpop.f32.mrf.mxu0
  %280 = vmatprep.mubr.f32.mxu0 %v204
  %281 = vmatmul.mubr.f32.gmra.mxu0 %v164
  %v282 = vpop.f32.mrf.mxu0
  %v283 = vadd.f32 %v21, %v282
  %v284 = vpop.f32.mrf.mxu0
  %285 = vdwg.mxu0
  %vm286 = vcmp.ge.f32.partialorder %v273, 0.0
  %vm287 = vcmp.ge.f32.partialorder %v278, 0.0
  %vm288 = vcmp.ge.f32.partialorder %v283, 0.0
  %v289 = vmul.f32 %v273, 0.2
  %v290 = vmul.f32 %v278, 0.2
  %v291 = vmul.f32 %v283, 0.2
  %v292 = vsel %vm286, %v273, %v289
  %v293 = vsel %vm287, %v278, %v290
  %v294 = vsel %vm288, %v283, %v291
  %v295 = vld [vmem:[%s4] sm:$0xff]
  %v296 = vadd.f32 %v292, %v295
  %v297 = vadd.f32 %v293, %v295
  %v298 = vadd.f32 %v294, %v295
  %vm299 = vcmask 130048
  %v301 = vsel %vm299, %v292, 0
  %v304 = vsel %vm299, %v293, 0
  %v307 = vsel %vm299, %v294, 0
  %v310 = vsel %vm299, %v296, 0
  %v313 = vsel %vm299, %v297, 0
  %v316 = vsel %vm299, %v298, 0
  %318 = vmatprep.subr.mxu0 0.0
  %319 = vmatpush1.msra.mxu0 0.0
  %320 = vmatprep.subr.mxu0 0.0
  %321 = vmatpush1.msra.mxu0 0.0
  %322 = vmatprep.subr.mxu0 0.0
  %323 = vmatpush1.msra.mxu0 0.0
  %324 = vmatprep.subr.mxu0 0.0
  %325 = vmatpush1.msra.mxu0 0.0
  %326 = vmatprep.subr.mxu0 0.0
  %327 = vmatpush1.msra.mxu0 0.0
  %328 = vmatprep.subr.mxu0 0.0
  %329 = vmatpush1.msra.mxu0 0.0
  %330 = vmatprep.subr.mxu0 0.0
  %331 = vmatpush1.msra.mxu0 0.0
  %332 = vmatprep.subr.mxu0 0.0
  %333 = vmatpush1.msra.mxu0 0.0
  %334 = vmatprep.subr.mxu0 0.0
  %335 = vmatpush1.msra.mxu0 0.0
  %336 = vmatprep.subr.mxu0 0.0
  %337 = vmatpush1.msra.mxu0 0.0
  %338 = vmatprep.subr.mxu0 0.0
  %339 = vmatpush1.msra.mxu0 0.0
  %340 = vmatprep.subr.mxu0 0.0
  %341 = vmatpush1.msra.mxu0 0.0
  %342 = vmatprep.subr.mxu0 0.0
  %343 = vmatpush1.msra.mxu0 0.0
  %344 = vmatprep.subr.mxu0 0.0
  %345 = vmatpush1.msra.mxu0 0.0
  %346 = vmatprep.subr.mxu0 0.0
  %347 = vmatpush1.msra.mxu0 %v24
  %348 = vmatprep.subr.mxu0 0.0
  %349 = vmatpush1.msra.mxu0 %v23
  %350 = vmatprep.subr.mxu0 0.0
  %351 = vmatpush2.msra.mxu0 0.0
  %352 = vmatprep.subr.mxu0 0.0
  %353 = vmatpush2.msra.mxu0 0.0
  %354 = vmatprep.subr.mxu0 0.0
  %355 = vmatpush2.msra.mxu0 0.0
  %356 = vmatprep.subr.mxu0 0.0
  %357 = vmatpush2.msra.mxu0 0.0
  %358 = vmatprep.subr.mxu0 0.0
  %359 = vmatpush2.msra.mxu0 0.0
  %360 = vmatprep.subr.mxu0 0.0
  %361 = vmatpush2.msra.mxu0 0.0
  %362 = vmatprep.subr.mxu0 0.0
  %363 = vmatpush2.msra.mxu0 0.0
  %364 = vmatprep.subr.mxu0 0.0
  %365 = vmatpush2.msra.mxu0 0.0
  %366 = vmatprep.subr.mxu0 0.0
  %367 = vmatpush2.msra.mxu0 0.0
  %368 = vmatprep.subr.mxu0 0.0
  %369 = vmatpush2.msra.mxu0 0.0
  %370 = vmatprep.subr.mxu0 0.0
  %371 = vmatpush2.msra.mxu0 0.0
  %372 = vmatprep.subr.mxu0 0.0
  %373 = vmatpush2.msra.mxu0 0.0
  %374 = vmatprep.subr.mxu0 0.0
  %375 = vmatpush2.msra.mxu0 0.0
  %376 = vmatprep.subr.mxu0 0.0
  %377 = vmatpush2.msra.mxu0 0.0
  %378 = vmatprep.subr.mxu0 0.0
  %379 = vmatpush2.msra.mxu0 0.0
  %380 = vmatprep.subr.mxu0 0.0
  %381 = vmatpush2.msra.mxu0 0.0
  %382 = vmatprep.mubr.f32.mxu0 0.0
  %383 = vmatmul.mubr.f32.gmra.mxu0 %v301
  %v384 = vpop.f32.mrf.mxu0
  %v385 = vadd.f32 0.0, %v384
  %v386 = vpop.f32.mrf.mxu0
  %387 = vmatprep.mubr.f32.mxu0 0.0
  %388 = vmatmul.mubr.f32.gmra.mxu0 %v304
  %v389 = vpop.f32.mrf.mxu0
  %v390 = vpop.f32.mrf.mxu0
  %391 = vmatprep.mubr.f32.mxu0 0.0
  %392 = vmatmul.mubr.f32.gmra.mxu0 %v307
  %v393 = vpop.f32.mrf.mxu0
  %v394 = vadd.f32 0.0, %v393
  %v395 = vpop.f32.mrf.mxu0
  %396 = vmatprep.mubr.f32.mxu0 0.0
  %397 = vmatmul.mubr.f32.gmra.mxu0 %v310
  %v398 = vpop.f32.mrf.mxu0
  %v399 = vadd.f32 0.0, %v398
  %v400 = vpop.f32.mrf.mxu0
  %401 = vmatprep.mubr.f32.mxu0 0.0
  %402 = vmatmul.mubr.f32.gmra.mxu0 %v313
  %v403 = vpop.f32.mrf.mxu0
  %v404 = vadd.f32 0.0, %v403
  %v405 = vpop.f32.mrf.mxu0
  %406 = vmatprep.mubr.f32.mxu0 0.0
  %407 = vmatmul.mubr.f32.gmra.mxu0 %v316
  %v408 = vpop.f32.mrf.mxu0
  %v409 = vadd.f32 0.0, %v408
  %v410 = vpop.f32.mrf.mxu0
  %411 = vdwg.mxu0
  %v412 = vadd.f32 %v385, %v22
  %v413 = vadd.f32 %v394, %v22
  %415 = vrot.lane.b32.xlu0 %v404, 127
  %v416 = vpop.permute.xlu0 %415
  %v418 = vadd.f32 %v399, %v416
  %v419 = vadd.f32 %v418, %v22
  %421 = vrot.lane.b32.xlu0 %v409, 127
  %v422 = vpop.permute.xlu0 %421
  %v424 = vadd.f32 %v404, %v422
  %v425 = vadd.f32 %v424, %v22
  %427 = vrot.lane.b32.xlu0 %v399, 127
  %v428 = vpop.permute.xlu0 %427
  %v430 = vadd.f32 %v409, %v428
  %v431 = vadd.f32 %v430, %v22
  %v432 = vlaneseq
  %v433 = vand.u32 %v432, 127
  %vm434 = vcmp.eq.s32.totalorder %v433, 0
  %436 = vset.pattern.permute.xlu0 0
  %437 = vperm.xlu0 %436, %v412
  %v438 = vpop.permute.xlu0 %437
  %v440 = vsel %vm434, %v438, 0.0
  %vm441 = vcmp.eq.s32.totalorder %v433, 1
  %443 = vset.pattern.permute.xlu0 0
  %444 = vperm.xlu0 %443, %v413
  %v445 = vpop.permute.xlu0 %444
  %v447 = vsel %vm441, %v445, 0.0
  %v448 = vadd.f32 %v440, %v447
  %vm449 = vcmp.eq.s32.totalorder %v433, 2
  %451 = vset.pattern.permute.xlu0 1
  %452 = vperm.xlu0 %451, %v419
  %v453 = vpop.permute.xlu0 %452
  %v455 = vsel %vm449, %v453, 0.0
  %v456 = vadd.f32 %v448, %v455
  %vm457 = vcmp.eq.s32.totalorder %v433, 3
  %459 = vset.pattern.permute.xlu0 1
  %460 = vperm.xlu0 %459, %v425
  %v461 = vpop.permute.xlu0 %460
  %v463 = vsel %vm457, %v461, 0.0
  %v464 = vadd.f32 %v456, %v463
  %vm465 = vcmp.eq.s32.totalorder %v433, 4
  %467 = vset.pattern.permute.xlu0 1
  %468 = vperm.xlu0 %467, %v431
  %v469 = vpop.permute.xlu0 %468
  %v471 = vsel %vm465, %v469, 0.0
  %v472 = vadd.f32 %v464, %v471
  %473 = vst.msk [vmem:[%s5] sm:$0xff] %vm299, %v296
  %474 = vst.msk [vmem:[%s5 + $0x8] sm:$0xff] %vm299, %v297
  %475 = vst.msk [vmem:[%s5 + $0x10] sm:$0xff] %vm299, %v298
  %476 = vst.msk [vmem:[%s5 + $0x18] sm:$0xff] %vm299, %v472
  // Predicated region
  $region22: #{forward.1} parent=0 // pred_check
    _
  $region23: #{forward.1} parent=0 // pred_check_branch
    %478 = sbr.rel (0) target = $region25
  $region24: #{forward.1} parent=0 // pred_region
    _
  $region25: #{forward.1} parent=0 // pred_fallthru
    _
  // Predicated region
  $region26: #{forward.1} parent=0 // pred_check
    _
  $region27: #{forward.1} parent=0 // pred_check_branch
    %480 = sbr.rel (0) target = $region29
  $region28: #{forward.1} parent=0 // pred_region
    _
  $region29: #{forward.1} parent=0 // pred_fallthru
    _

</llo_original>
